<compile_context>
chip_gen: v7x
topology: tpu7x:2x2x1
jax: 0.10.0
libtpu: 0.0.40
codegen_flags: <defaults>
</compile_context>

<pallas_src>
import functools

import jax
import jax.numpy as jnp
from jax import lax
from jax.experimental import pallas as pl
from jax.experimental.pallas import tpu as pltpu


def _loss_kernel(rgbp_ref, rgbg_ref, grad_ref, logit_ref, tgt_ref, out_ref,
                 acc_ref, *, n, tn):
    """Accumulates per-lane loss partials into one merged scratch buffer.

    acc_ref rows: 0 = rgb |diff| sum, 1 = eikonal, 2 = semantic NLL, 3 = valid count.
    """
    i = pl.program_id(0)

    @pl.when(i == 0)
    def _init():
        acc_ref[...] = jnp.zeros_like(acc_ref)

    # ---- RGB L1: explicit per-row VALU adds (keeps work off the XLU) ----
    d0 = jnp.abs(rgbp_ref[0:1, :] - rgbg_ref[0:1, :])
    d1 = jnp.abs(rgbp_ref[1:2, :] - rgbg_ref[1:2, :])
    d2 = jnp.abs(rgbp_ref[2:3, :] - rgbg_ref[2:3, :])
    rgb_row = d0 + d1 + d2                                        # (1, tn)

    # ---- Eikonal: (||grad||_2 - 1)^2 per ray, explicit row squares on the VALU ----
    g0 = grad_ref[0:1, :]
    g1 = grad_ref[1:2, :]
    g2 = grad_ref[2:3, :]
    eik_row = (jnp.sqrt(g0 * g0 + g1 * g1 + g2 * g2) - 1.0) ** 2  # (1, tn)

    # ---- Semantic cross-entropy with ignore_index = -1 (per-lane NLL) ----
    logits = logit_ref[...]                                       # (C, tn)
    m = jnp.max(logits, axis=0, keepdims=True)                    # (1, tn)
    lse = m + jnp.log(jnp.sum(jnp.exp(logits - m), axis=0, keepdims=True))
    tgt = tgt_ref[...]                                            # (1, tn) int32
    row = lax.broadcasted_iota(jnp.int32, logits.shape, 0)        # (C, tn)
    picked = jnp.sum(jnp.where(row == tgt, logits, 0.0), axis=0, keepdims=True)
    valid = tgt != -1                                             # (1, tn)
    # TODO(synk): targets outside [0, C) other than -1 are counted valid with
    # picked = 0 (torch CrossEntropyLoss would raise instead).

    # ---- In-bounds mask for the (possibly partial) last tile; no padded copies ----
    if n % tn != 0:
        lane = lax.broadcasted_iota(jnp.int32, (1, tn), 1)
        in_bounds = (i * tn + lane) < n                           # (1, tn)
        rgb_row = jnp.where(in_bounds, rgb_row, 0.0)
        eik_row = jnp.where(in_bounds, eik_row, 0.0)
        valid = jnp.logical_and(valid, in_bounds)

    sem_row = jnp.where(valid, lse - picked, 0.0)
    cnt_row = valid.astype(jnp.float32)

    acc_ref[0:1, :] += rgb_row
    acc_ref[1:2, :] += eik_row
    acc_ref[2:3, :] += sem_row
    acc_ref[3:4, :] += cnt_row

    # ---- Deferred cross-lane reduction + single lane-dense (8,128) store ----
    @pl.when(i == pl.num_programs(0) - 1)
    def _finalize():
        totals = jnp.sum(acc_ref[...], axis=1, keepdims=True)     # (8, 1)
        out_ref[...] = jnp.broadcast_to(totals, out_ref.shape)    # unmasked vst


def _partial_sums(rgbp_t, rgbg_t, grad_t, logits_t, tgt_2d, *, tn):
    n = rgbp_t.shape[1]
    c = logits_t.shape[0]
    num_tiles = pl.cdiv(n, tn)
    kernel = functools.partial(_loss_kernel, n=n, tn=tn)

    # TODO(synk): on v7x, a leading pltpu.CORE_PARALLEL grid axis could shard the
    # reduction across the two TensorCores; kept single-axis for portability.
    return pl.pallas_call(
        kernel,
        out_shape=jax.ShapeDtypeStruct((8, 128), jnp.float32),
        grid_spec=pltpu.PrefetchScalarGridSpec(
            num_scalar_prefetch=0,
            grid=(num_tiles,),
            in_specs=[
                pl.BlockSpec((3, tn), lambda i: (0, i)),   # rgb_pred.T
                pl.BlockSpec((3, tn), lambda i: (0, i)),   # rgb_gt.T
                pl.BlockSpec((3, tn), lambda i: (0, i)),   # grad_theta.T
                pl.BlockSpec((c, tn), lambda i: (0, i)),   # logits.T
                pl.BlockSpec((1, tn), lambda i: (0, i)),   # targets
            ],
            out_specs=pl.BlockSpec((8, 128), lambda i: (0, 0)),
            scratch_shapes=[pltpu.VMEM((8, tn), jnp.float32)],   # merged accumulator
        ),
        compiler_params=pltpu.CompilerParams(
            dimension_semantics=("arbitrary",)),
    )(rgbp_t, rgbg_t, grad_t, logits_t, tgt_2d)


def _round_up(x, m):
    return ((x + m - 1) // m) * m


def _pick_tile(n, c, tn_max):
    """Largest lane tile (multiple of 128) whose double-buffered footprint fits
    comfortably under v5e's 16 MiB default scoped-VMEM limit."""
    per_lane_bytes = 2 * (10 + c) * 4 + 8 * 4   # inputs (double-buffered) + scratch
    budget = 12 * 1024 * 1024
    cap = max(128, (budget // per_lane_bytes) // 128 * 128)
    return max(128, min(tn_max, cap, _round_up(n, 128)))


def obj_sdf_loss(model_outputs, ground_truth, *, eikonal_weight, semantic_weight,
                 seg_flag=True, tn_max=32768):
    """JAX/Pallas equivalent of ObjSDFLoss.forward."""
    rgb_values = model_outputs["rgb_values"].astype(jnp.float32)        # (N, 3)
    rgb_gt = ground_truth["rgb"].reshape(-1, 3).astype(jnp.float32)     # (N, 3)
    n = rgb_values.shape[0]

    has_grad = "grad_theta" in model_outputs
    # When grad_theta is absent the eikonal partial is ignored, so reuse
    # rgb_values as a placeholder input (no extra HBM array is materialized).
    grad_theta = (model_outputs["grad_theta"].astype(jnp.float32)
                  if has_grad else rgb_values)

    use_sem = seg_flag and ("semantic_values" in model_outputs)
    if use_sem:
        semantic_values = model_outputs["semantic_values"].astype(jnp.float32)
        semantic_gt = ground_truth["segs"].reshape(-1).astype(jnp.int32)
    else:
        semantic_values = jnp.zeros((n, 1), jnp.float32)
        semantic_gt = jnp.full((n,), -1, jnp.int32)
    c = semantic_values.shape[-1]

    tn = _pick_tile(n, c, tn_max)

    # Lane-dense layout: ray index on the lane (last) axis.  No concat / pad copies.
    partials = _partial_sums(
        rgb_values.T, rgb_gt.T, grad_theta.T,
        semantic_values.T, semantic_gt.reshape(1, -1), tn=tn)

    rgb_sum = partials[0, 0]
    eik_sum = partials[1, 0]
    sem_sum = partials[2, 0]
    cnt = partials[3, 0]

    rgb_loss = rgb_sum / (n * 3.0)
    eikonal_loss = eik_sum / float(n) if has_grad else jnp.float32(0.0)
    # TODO(synk): torch CrossEntropyLoss returns NaN when every target is ignored;
    # we guard the divide-by-zero instead.
    semantic_loss = (sem_sum / jnp.maximum(cnt, 1.0)) if use_sem else jnp.float32(0.0)

    loss = rgb_loss + eikonal_weight * eikonal_loss + semantic_weight * semantic_loss
    return {
        "loss": loss,
        "rgb_loss": rgb_loss,
        "eikonal_loss": eikonal_loss,
        "semantic_loss": semantic_loss,
    }


if __name__ == "__main__":
    key = jax.random.PRNGKey(0)
    N, C = 300, 4                       # non-multiple of 128 -> exercises masked last tile
    k1, k2, k3, k4, k5 = jax.random.split(key, 5)

    rgb_values = jax.random.uniform(k1, (N, 3), jnp.float32)
    rgb_gt = jax.random.uniform(k2, (1, N, 3), jnp.float32)          # like ground_truth['rgb']
    grad_theta = jax.random.normal(k3, (N, 3), jnp.float32)
    semantic_values = jax.random.normal(k4, (N, C), jnp.float32)
    segs = jax.random.randint(k5, (1, N, 1), -1, C)                   # includes ignore_index=-1

    model_outputs = {
        "rgb_values": rgb_values,
        "grad_theta": grad_theta,
        "semantic_values": semantic_values,
    }
    ground_truth = {"rgb": rgb_gt, "segs": segs}

    out = obj_sdf_loss(model_outputs, ground_truth,
                       eikonal_weight=0.1, semantic_weight=0.04, seg_flag=True)
    jax.block_until_ready(out["loss"])

    # Pure-JAX reference check.
    ref_rgb = jnp.mean(jnp.abs(rgb_values - rgb_gt.reshape(-1, 3)))
    ref_eik = jnp.mean((jnp.linalg.norm(grad_theta, axis=1) - 1.0) ** 2)
    tgt = segs.reshape(-1).astype(jnp.int32)
    lse = jax.nn.logsumexp(semantic_values, axis=-1)
    picked = jnp.take_along_axis(semantic_values,
                                 jnp.clip(tgt, 0, C - 1)[:, None], axis=-1)[:, 0]
    valid = tgt != -1
    ref_sem = jnp.sum(jnp.where(valid, lse - picked, 0.0)) / jnp.maximum(jnp.sum(valid), 1)
    ref_loss = ref_rgb + 0.1 * ref_eik + 0.04 * ref_sem

    assert jnp.allclose(out["rgb_loss"], ref_rgb, atol=1e-5)
    assert jnp.allclose(out["eikonal_loss"], ref_eik, atol=1e-5)
    assert jnp.allclose(out["semantic_loss"], ref_sem, atol=1e-5)
    assert jnp.allclose(out["loss"], ref_loss, atol=1e-5)

    print("KERNEL_OK")
</pallas_src>

<mosaic_0001>
module attributes {stable_mosaic.version = 11 : i64} {
  func.func @_loss_kernel(%arg0: i32, %arg1: memref<3x384xf32, #tpu.memory_space<vmem>>, %arg2: memref<3x384xf32, #tpu.memory_space<vmem>>, %arg3: memref<3x384xf32, #tpu.memory_space<vmem>>, %arg4: memref<4x384xf32, #tpu.memory_space<vmem>>, %arg5: memref<1x384xi32, #tpu.memory_space<vmem>>, %arg6: memref<8x128xf32, #tpu.memory_space<vmem>>, %arg7: memref<8x384xf32, #tpu.memory_space<vmem>>) attributes {dimension_semantics = [#tpu.dimension_semantics<arbitrary>], iteration_bounds = array<i64: 1>, scalar_prefetch = 0 : i64, scratch_operands = 1 : i64, tpu.core_type = #tpu.core_type<tc>, window_params = [{transform_indices = @transform_0, window_bounds = array<i64: 3, 384>}, {transform_indices = @transform_1, window_bounds = array<i64: 3, 384>}, {transform_indices = @transform_2, window_bounds = array<i64: 3, 384>}, {transform_indices = @transform_3, window_bounds = array<i64: 4, 384>}, {transform_indices = @transform_4, window_bounds = array<i64: 1, 384>}, {pipeline_mode = #tpu.pipeline_mode<synchronous>, transform_indices = @transform_5, window_bounds = array<i64: 8, 128>}]} {
    %c0_i32 = arith.constant 0 : i32
    %0 = arith.cmpi eq, %arg0, %c0_i32 : i32
    %1 = arith.extui %0 : i1 to i32
    %c0_i32_0 = arith.constant 0 : i32
    %2 = arith.cmpi ne, %1, %c0_i32_0 : i32
    scf.if %2 {
      %cst_44 = arith.constant 0.000000e+00 : f32
      %80 = vector.broadcast %cst_44 : f32 to vector<8x384xf32>
      %c0_45 = arith.constant 0 : index
      %c0_46 = arith.constant 0 : index
      %81 = vector.load %arg7[%c0_45, %c0_46] : memref<8x384xf32, #tpu.memory_space<vmem>>, vector<8x384xf32>
      tpu.vector_store %arg7[%c0_45, %c0_46], %80 {strides = array<i32>} : memref<8x384xf32, #tpu.memory_space<vmem>>, vector<8x384xf32>,
    } else {
    }
    %c0 = arith.constant 0 : index
    %c0_1 = arith.constant 0 : index
    %3 = vector.load %arg1[%c0, %c0_1] : memref<3x384xf32, #tpu.memory_space<vmem>>, vector<1x384xf32>
    %c0_2 = arith.constant 0 : index
    %c0_3 = arith.constant 0 : index
    %4 = vector.load %arg2[%c0_2, %c0_3] : memref<3x384xf32, #tpu.memory_space<vmem>>, vector<1x384xf32>
    %5 = arith.subf %3, %4 : vector<1x384xf32>
    %6 = math.absf %5 : vector<1x384xf32>
    %c1 = arith.constant 1 : index
    %c0_4 = arith.constant 0 : index
    %7 = vector.load %arg1[%c1, %c0_4] : memref<3x384xf32, #tpu.memory_space<vmem>>, vector<1x384xf32>
    %c1_5 = arith.constant 1 : index
    %c0_6 = arith.constant 0 : index
    %8 = vector.load %arg2[%c1_5, %c0_6] : memref<3x384xf32, #tpu.memory_space<vmem>>, vector<1x384xf32>
    %9 = arith.subf %7, %8 : vector<1x384xf32>
    %10 = math.absf %9 : vector<1x384xf32>
    %c2 = arith.constant 2 : index
    %c0_7 = arith.constant 0 : index
    %11 = vector.load %arg1[%c2, %c0_7] : memref<3x384xf32, #tpu.memory_space<vmem>>, vector<1x384xf32>
    %c2_8 = arith.constant 2 : index
    %c0_9 = arith.constant 0 : index
    %12 = vector.load %arg2[%c2_8, %c0_9] : memref<3x384xf32, #tpu.memory_space<vmem>>, vector<1x384xf32>
    %13 = arith.subf %11, %12 : vector<1x384xf32>
    %14 = math.absf %13 : vector<1x384xf32>
    %15 = arith.addf %6, %10 : vector<1x384xf32>
    %16 = arith.addf %15, %14 : vector<1x384xf32>
    %c0_10 = arith.constant 0 : index
    %c0_11 = arith.constant 0 : index
    %17 = vector.load %arg3[%c0_10, %c0_11] : memref<3x384xf32, #tpu.memory_space<vmem>>, vector<1x384xf32>
    %c1_12 = arith.constant 1 : index
    %c0_13 = arith.constant 0 : index
    %18 = vector.load %arg3[%c1_12, %c0_13] : memref<3x384xf32, #tpu.memory_space<vmem>>, vector<1x384xf32>
    %c2_14 = arith.constant 2 : index
    %c0_15 = arith.constant 0 : index
    %19 = vector.load %arg3[%c2_14, %c0_15] : memref<3x384xf32, #tpu.memory_space<vmem>>, vector<1x384xf32>
    %20 = arith.mulf %17, %17 : vector<1x384xf32>
    %21 = arith.mulf %18, %18 : vector<1x384xf32>
    %22 = arith.addf %20, %21 : vector<1x384xf32>
    %23 = arith.mulf %19, %19 : vector<1x384xf32>
    %24 = arith.addf %22, %23 : vector<1x384xf32>
    %25 = math.sqrt %24 : vector<1x384xf32>
    %cst = arith.constant 1.000000e+00 : f32
    %26 = vector.broadcast %cst : f32 to vector<1x384xf32>
    %27 = arith.subf %25, %26 : vector<1x384xf32>
    %28 = arith.mulf %27, %27 : vector<1x384xf32>
    %c0_16 = arith.constant 0 : index
    %c0_17 = arith.constant 0 : index
    %29 = vector.load %arg4[%c0_16, %c0_17] : memref<4x384xf32, #tpu.memory_space<vmem>>, vector<4x384xf32>
    %cst_18 = arith.constant dense<0xFF800000> : vector<384xf32>
    %30 = vector.multi_reduction <maximumf>, %29, %cst_18 [0] : vector<4x384xf32> to vector<384xf32>
    %31 = vector.shape_cast %30 : vector<384xf32> to vector<1x384xf32>
    %32 = vector.broadcast %31 : vector<1x384xf32> to vector<4x384xf32>
    %33 = arith.subf %29, %32 : vector<4x384xf32>
    %34 = math.exp %33 : vector<4x384xf32>
    %cst_19 = arith.constant dense<0.000000e+00> : vector<384xf32>
    %35 = vector.multi_reduction <add>, %34, %cst_19 [0] : vector<4x384xf32> to vector<384xf32>
    %36 = vector.shape_cast %35 : vector<384xf32> to vector<1x384xf32>
    %37 = math.log %36 : vector<1x384xf32>
    %38 = arith.addf %31, %37 : vector<1x384xf32>
    %c0_20 = arith.constant 0 : index
    %c0_21 = arith.constant 0 : index
    %39 = vector.load %arg5[%c0_20, %c0_21] : memref<1x384xi32, #tpu.memory_space<vmem>>, vector<1x384xi32>
    %40 = tpu.iota {dimensions = array<i32: 0>} : vector<4x384xi32>
    %41 = vector.broadcast %39 : vector<1x384xi32> to vector<4x384xi32>
    %42 = arith.cmpi eq, %40, %41 : vector<4x384xi32>
    %cst_22 = arith.constant 0.000000e+00 : f32
    %43 = vector.broadcast %cst_22 : f32 to vector<4x384xf32>
    %44 = arith.select %42, %29, %43 : vector<4x384xi1>, vector<4x384xf32>
    %cst_23 = arith.constant dense<0.000000e+00> : vector<384xf32>
    %45 = vector.multi_reduction <add>, %44, %cst_23 [0] : vector<4x384xf32> to vector<384xf32>
    %46 = vector.shape_cast %45 : vector<384xf32> to vector<1x384xf32>
    %c-1_i32 = arith.constant -1 : i32
    %47 = vector.broadcast %c-1_i32 : i32 to vector<1x384xi32>
    %48 = arith.cmpi ne, %39, %47 : vector<1x384xi32>
    %49 = tpu.iota {dimensions = array<i32: 1>} : vector<1x384xi32>
    %c384_i32 = arith.constant 384 : i32
    %50 = arith.muli %arg0, %c384_i32 : i32
    %51 = vector.broadcast %50 : i32 to vector<1x384xi32>
    %52 = arith.addi %51, %49 : vector<1x384xi32>
    %c300_i32 = arith.constant 300 : i32
    %53 = vector.broadcast %c300_i32 : i32 to vector<1x384xi32>
    %54 = arith.cmpi slt, %52, %53 : vector<1x384xi32>
    %cst_24 = arith.constant 0.000000e+00 : f32
    %55 = vector.broadcast %cst_24 : f32 to vector<1x384xf32>
    %56 = arith.select %54, %16, %55 : vector<1x384xi1>, vector<1x384xf32>
    %cst_25 = arith.constant 0.000000e+00 : f32
    %57 = vector.broadcast %cst_25 : f32 to vector<1x384xf32>
    %58 = arith.select %54, %28, %57 : vector<1x384xi1>, vector<1x384xf32>
    %59 = arith.andi %48, %54 : vector<1x384xi1>
    %60 = arith.subf %38, %46 : vector<1x384xf32>
    %cst_26 = arith.constant 0.000000e+00 : f32
    %61 = vector.broadcast %cst_26 : f32 to vector<1x384xf32>
    %62 = arith.select %59, %60, %61 : vector<1x384xi1>, vector<1x384xf32>
    %63 = arith.extui %59 : vector<1x384xi1> to vector<1x384xi32>
    %64 = arith.sitofp %63 : vector<1x384xi32> to vector<1x384xf32>
    %c0_27 = arith.constant 0 : index
    %c0_28 = arith.constant 0 : index
    %65 = vector.load %arg7[%c0_27, %c0_28] : memref<8x384xf32, #tpu.memory_space<vmem>>, vector<1x384xf32>
    %66 = arith.addf %65, %56 : vector<1x384xf32>
    %c0_29 = arith.constant 0 : index
    %c0_30 = arith.constant 0 : index
    %67 = vector.load %arg7[%c0_29, %c0_30] : memref<8x384xf32, #tpu.memory_space<vmem>>, vector<1x384xf32>
    tpu.vector_store %arg7[%c0_29, %c0_30], %66 {strides = array<i32>} : memref<8x384xf32, #tpu.memory_space<vmem>>, vector<1x384xf32>,
    %c1_31 = arith.constant 1 : index
    %c0_32 = arith.constant 0 : index
    %68 = vector.load %arg7[%c1_31, %c0_32] : memref<8x384xf32, #tpu.memory_space<vmem>>, vector<1x384xf32>
    %69 = arith.addf %68, %58 : vector<1x384xf32>
    %c1_33 = arith.constant 1 : index
    %c0_34 = arith.constant 0 : index
    %70 = vector.load %arg7[%c1_33, %c0_34] : memref<8x384xf32, #tpu.memory_space<vmem>>, vector<1x384xf32>
    tpu.vector_store %arg7[%c1_33, %c0_34], %69 {strides = array<i32>} : memref<8x384xf32, #tpu.memory_space<vmem>>, vector<1x384xf32>,
    %c2_35 = arith.constant 2 : index
    %c0_36 = arith.constant 0 : index
    %71 = vector.load %arg7[%c2_35, %c0_36] : memref<8x384xf32, #tpu.memory_space<vmem>>, vector<1x384xf32>
    %72 = arith.addf %71, %62 : vector<1x384xf32>
    %c2_37 = arith.constant 2 : index
    %c0_38 = arith.constant 0 : index
    %73 = vector.load %arg7[%c2_37, %c0_38] : memref<8x384xf32, #tpu.memory_space<vmem>>, vector<1x384xf32>
    tpu.vector_store %arg7[%c2_37, %c0_38], %72 {strides = array<i32>} : memref<8x384xf32, #tpu.memory_space<vmem>>, vector<1x384xf32>,
    %c3 = arith.constant 3 : index
    %c0_39 = arith.constant 0 : index
    %74 = vector.load %arg7[%c3, %c0_39] : memref<8x384xf32, #tpu.memory_space<vmem>>, vector<1x384xf32>
    %75 = arith.addf %74, %64 : vector<1x384xf32>
    %c3_40 = arith.constant 3 : index
    %c0_41 = arith.constant 0 : index
    %76 = vector.load %arg7[%c3_40, %c0_41] : memref<8x384xf32, #tpu.memory_space<vmem>>, vector<1x384xf32>
    tpu.vector_store %arg7[%c3_40, %c0_41], %75 {strides = array<i32>} : memref<8x384xf32, #tpu.memory_space<vmem>>, vector<1x384xf32>,
    %c0_i32_42 = arith.constant 0 : i32
    %77 = arith.cmpi eq, %arg0, %c0_i32_42 : i32
    %78 = arith.extui %77 : i1 to i32
    %c0_i32_43 = arith.constant 0 : i32
    %79 = arith.cmpi ne, %78, %c0_i32_43 : i32
    scf.if %79 {
      %c0_44 = arith.constant 0 : index
      %c0_45 = arith.constant 0 : index
      %80 = vector.load %arg7[%c0_44, %c0_45] : memref<8x384xf32, #tpu.memory_space<vmem>>, vector<8x384xf32>
      %cst_46 = arith.constant dense<0.000000e+00> : vector<8xf32>
      %81 = vector.multi_reduction <add>, %80, %cst_46 [1] : vector<8x384xf32> to vector<8xf32>
      %82 = vector.shape_cast %81 : vector<8xf32> to vector<8x1xf32>
      %83 = vector.shape_cast %82 : vector<8x1xf32> to vector<8x1xf32>
      %84 = vector.broadcast %83 : vector<8x1xf32> to vector<8x128xf32>
      %c0_47 = arith.constant 0 : index
      %c0_48 = arith.constant 0 : index
      %85 = vector.load %arg6[%c0_47, %c0_48] : memref<8x128xf32, #tpu.memory_space<vmem>>, vector<8x128xf32>
      tpu.vector_store %arg6[%c0_47, %c0_48], %84 {strides = array<i32>} : memref<8x128xf32, #tpu.memory_space<vmem>>, vector<8x128xf32>,
    } else {
    }
    return
  }
  func.func @transform_0(%arg0: i32) -> (i32, i32) {
    %c0_i32 = arith.constant 0 : i32
    %c0_i32_0 = arith.constant 0 : i32
    return %c0_i32, %arg0 : i32, i32
  }
  func.func @transform_1(%arg0: i32) -> (i32, i32) {
    %c0_i32 = arith.constant 0 : i32
    %c0_i32_0 = arith.constant 0 : i32
    return %c0_i32, %arg0 : i32, i32
  }
  func.func @transform_2(%arg0: i32) -> (i32, i32) {
    %c0_i32 = arith.constant 0 : i32
    %c0_i32_0 = arith.constant 0 : i32
    return %c0_i32, %arg0 : i32, i32
  }
  func.func @transform_3(%arg0: i32) -> (i32, i32) {
    %c0_i32 = arith.constant 0 : i32
    %c0_i32_0 = arith.constant 0 : i32
    return %c0_i32, %arg0 : i32, i32
  }
  func.func @transform_4(%arg0: i32) -> (i32, i32) {
    %c0_i32 = arith.constant 0 : i32
    %c0_i32_0 = arith.constant 0 : i32
    return %c0_i32, %arg0 : i32, i32
  }
  func.func @transform_5(%arg0: i32) -> (i32, i32) {
    %c0_i32 = arith.constant 0 : i32
    %c0_i32_0 = arith.constant 0 : i32
    %c0_i32_1 = arith.constant 0 : i32
    return %c0_i32, %c0_i32_0 : i32, i32
  }
}

</mosaic_0001>

<llo_original>
// kernel: tpu_custom_call.1
$region0: #{tpu_custom_call.1}
  #allocation0 [shape = 'u32[]', space=smem, size = 0x4, offset = 0x4, fixed_abs, tag = 'smem constant byte address 0x4 - core index']
  #allocation1 [shape = 'u32[144,128]{1,0:T(1,128)}', space=vmem, size = 0x12000, scoped, tag = 'internal scratch']
  #allocation2 [shape = 'f32[8,384]{1,0:T(8,128)}', space=vmem, size = 0x3000, scoped, tag = 'scratch operand']
  %s0 = inlined_call_operand.hbm [shape: f32[3,300], index: 0, kind: input, shape index: {}]
  %s1 = inlined_call_operand.hbm [shape: f32[3,300], index: 1, kind: input, shape index: {}]
  %s2 = inlined_call_operand.hbm [shape: f32[3,300], index: 2, kind: input, shape index: {}]
  %s3 = inlined_call_operand.hbm [shape: f32[4,300], index: 3, kind: input, shape index: {}]
  %s4 = inlined_call_operand.vmem [shape: s32[1,300], index: 4, kind: input, shape index: {}]
  %s5 = inlined_call_operand.hbm [shape: f32[8,128], index: 5, kind: output, shape index: {}]
  %s6 = sld [smem:[#allocation0]]
  $region54: #{tpu_custom_call.1} parent=0
    _
  %s8 = ssub.s32 1, %s6
  %s9 = scalar_select 0, %s8, %s6
  $region1: #{tpu_custom_call.1} parent=0
    #allocation3 [shape = 'u8[6144]{0}', space=vmem, size = 0x1800, scoped, tag = 'input window, operand 0, single buffered']
    #allocation4 [shape = 's32[1]{0}', space=sflag, size = 0x4, scoped, tag = 'scoped memory for tpu_custom_call.1']
    #allocation5 [shape = 's32[1]{0}', space=sflag, size = 0x4, scoped, tag = 'scoped memory for tpu_custom_call.1']
    #allocation6 [shape = 'u8[6144]{0}', space=vmem, size = 0x1800, scoped, tag = 'input window, operand 1, single buffered']
    #allocation7 [shape = 's32[1]{0}', space=sflag, size = 0x4, scoped, tag = 'scoped memory for tpu_custom_call.1']
    #allocation8 [shape = 'u8[6144]{0}', space=vmem, size = 0x1800, scoped, tag = 'input window, operand 2, single buffered']
    #allocation9 [shape = 'u8[6144]{0}', space=vmem, size = 0x1800, scoped, tag = 'input window, operand 3, single buffered']
    #allocation10 [shape = 's32[1]{0}', space=sflag, size = 0x4, scoped, tag = 'scoped memory for tpu_custom_call.1']
    #allocation11 [shape = 'u8[4096]{0}', space=vmem, size = 0x1000, scoped, tag = 'output window, operand 0, single buffered']
    %10 = vsyncpa [#allocation4], 0
    %11 = vsyncpa [#allocation7], 0
    %12 = vsyncpa [#allocation10], 0
    %13 = vsyncpa [#allocation5], 0
    // Predicated region
    $region2: #{tpu_custom_call.1} parent=1 // pred_check
      _
    $region3: #{tpu_custom_call.1} parent=1 // pred_check_branch
      %15 = sbr.rel (0) target = $region5
    $region4: #{tpu_custom_call.1} parent=1 // pred_region
      %s17 = ssub.s32 192, 192
      %18 = vsyncadd [#allocation4], %s17
      %s20 = sshll.u32 [#allocation3], 4
      %s21 = int_to_ptr.vmem [resolvable:$true] %s20
      %23 = dma.hbm_to_vmem [thread:$0]  %s0, 192, %s21, [#allocation4]
    $region5: #{tpu_custom_call.1} parent=1 // pred_fallthru
      _
    // Predicated region
    $region6: #{tpu_custom_call.1} parent=1 // pred_check
      _
    $region7: #{tpu_custom_call.1} parent=1 // pred_check_branch
      %25 = sbr.rel (0) target = $region9
    $region8: #{tpu_custom_call.1} parent=1 // pred_region
      %s27 = ssub.s32 192, 192
      %28 = vsyncadd [#allocation7], %s27
      %s30 = sshll.u32 [#allocation6], 4
      %s31 = int_to_ptr.vmem [resolvable:$true] %s30
      %33 = dma.hbm_to_vmem [thread:$0]  %s1, 192, %s31, [#allocation7]
    $region9: #{tpu_custom_call.1} parent=1 // pred_fallthru
      _
    // Predicated region
    $region10: #{tpu_custom_call.1} parent=1 // pred_check
      _
    $region11: #{tpu_custom_call.1} parent=1 // pred_check_branch
      %35 = sbr.rel (0) target = $region13
    $region12: #{tpu_custom_call.1} parent=1 // pred_region
      %s37 = ssub.s32 192, 192
      %38 = vsyncadd [#allocation7], %s37
      %s40 = sshll.u32 [#allocation8], 4
      %s41 = int_to_ptr.vmem [resolvable:$true] %s40
      %43 = dma.hbm_to_vmem [thread:$0]  %s2, 192, %s41, [#allocation7]
    $region13: #{tpu_custom_call.1} parent=1 // pred_fallthru
      _
    // Predicated region
    $region14: #{tpu_custom_call.1} parent=1 // pred_check
      _
    $region15: #{tpu_custom_call.1} parent=1 // pred_check_branch
      %45 = sbr.rel (0) target = $region17
    $region16: #{tpu_custom_call.1} parent=1 // pred_region
      %s47 = ssub.s32 192, 192
      %48 = vsyncadd [#allocation10], %s47
      %s50 = sshll.u32 [#allocation9], 4
      %s51 = int_to_ptr.vmem [resolvable:$true] %s50
      %53 = dma.hbm_to_vmem [thread:$0]  %s3, 192, %s51, [#allocation10]
    $region17: #{tpu_custom_call.1} parent=1 // pred_fallthru
      _
    // Predicated region
    $region18: #{tpu_custom_call.1} parent=1 // pred_check
      _
    $region19: #{tpu_custom_call.1} parent=1 // pred_check_branch
      %55 = sbr.rel (0) target = $region21
    $region20: #{tpu_custom_call.1} parent=1 // pred_region
      _
    $region21: #{tpu_custom_call.1} parent=1 // pred_fallthru
      _
    // Predicated region
    $region22: #{tpu_custom_call.1} parent=1 // pred_check
      _
    $region23: #{tpu_custom_call.1} parent=1 // pred_check_branch
      %57 = sbr.rel (0) target = $region25
    $region24: #{tpu_custom_call.1} parent=1 // pred_region
      %58 = dma.done [#allocation4], 192
    $region25: #{tpu_custom_call.1} parent=1 // pred_fallthru
      _
    // Predicated region
    $region26: #{tpu_custom_call.1} parent=1 // pred_check
      _
    $region27: #{tpu_custom_call.1} parent=1 // pred_check_branch
      %60 = sbr.rel (0) target = $region29
    $region28: #{tpu_custom_call.1} parent=1 // pred_region
      %61 = dma.done [#allocation7], 192
    $region29: #{tpu_custom_call.1} parent=1 // pred_fallthru
      _
    // Predicated region
    $region30: #{tpu_custom_call.1} parent=1 // pred_check
      _
    $region31: #{tpu_custom_call.1} parent=1 // pred_check_branch
      %63 = sbr.rel (0) target = $region33
    $region32: #{tpu_custom_call.1} parent=1 // pred_region
      %64 = dma.done [#allocation7], 192
    $region33: #{tpu_custom_call.1} parent=1 // pred_fallthru
      _
    // Predicated region
    $region34: #{tpu_custom_call.1} parent=1 // pred_check
      _
    $region35: #{tpu_custom_call.1} parent=1 // pred_check_branch
      %66 = sbr.rel (0) target = $region37
    $region36: #{tpu_custom_call.1} parent=1 // pred_region
      %67 = dma.done [#allocation10], 192
    $region37: #{tpu_custom_call.1} parent=1 // pred_fallthru
      _
    %p68 = scmp.eq.s32.totalorder 0, 0
    // Predicated region
    $region38: #{tpu_custom_call.1} parent=1 // pred_check
      %p69 = pneg %p68
    $region39: #{tpu_custom_call.1} parent=1 // pred_check_branch
      %71 = sbr.rel (%p69) target = $region41
    $region40: #{tpu_custom_call.1} parent=1 // pred_region
      %72 = vst [vmem:[#allocation2] sm:$0xff] 0.0
      %73 = vst [vmem:[#allocation2 + $0x8] sm:$0xff] 0.0
      %74 = vst [vmem:[#allocation2 + $0x10] sm:$0xff] 0.0
    $region41: #{tpu_custom_call.1} parent=1 // pred_fallthru
      _
    %v75 = vld [vmem:[#allocation3] ss:$4 sm:$0x7]
    %v76 = vld [vmem:[#allocation6] ss:$4 sm:$0x7]
    %v77 = vsub.f32 %v75, %v76
    %v78 = vand.u32 2147483647, %v77
    %s79 = scalar_lea.vmem [#allocation3], 1
    %v80 = vld [vmem:[%s79] ss:$4 sm:$0x7]
    %s81 = scalar_lea.vmem [#allocation6], 1
    %v82 = vld [vmem:[%s81] ss:$4 sm:$0x7]
    %v83 = vsub.f32 %v80, %v82
    %v84 = vand.u32 2147483647, %v83
    %s85 = scalar_lea.vmem [#allocation3], 2
    %v86 = vld [vmem:[%s85] ss:$4 sm:$0x7]
    %s87 = scalar_lea.vmem [#allocation6], 2
    %v88 = vld [vmem:[%s87] ss:$4 sm:$0x7]
    %v89 = vsub.f32 %v86, %v88
    %v90 = vand.u32 2147483647, %v89
    %v91 = vadd.f32 %v78, %v84
    %v92 = vadd.f32 %v91, %v90
    %v93 = vld [vmem:[#allocation8] ss:$4 sm:$0x7]
    %s94 = scalar_lea.vmem [#allocation8], 1
    %v95 = vld [vmem:[%s94] ss:$4 sm:$0x7]
    %s96 = scalar_lea.vmem [#allocation8], 2
    %v97 = vld [vmem:[%s96] ss:$4 sm:$0x7]
    %v98 = vmul.f32 %v93, %v93
    %v99 = vmul.f32 %v95, %v95
    %v100 = vadd.f32 %v98, %v99
    %v101 = vmul.f32 %v97, %v97
    %v102 = vadd.f32 %v100, %v101
    %v103 = vrsqrt.pop %v102
    %v104 = vmul.f32 %v102, %v103
    %vm105 = vcmp.eq.f32.partialorder %v102, inf
    %v106 = vsel %vm105, %v102, %v104
    %vm107 = vcmp.eq.f32.partialorder %v102, 0.0
    %v108 = vand.u32 %v102, 2147483648
    %v109 = vsel %vm107, %v108, %v106
    %v110 = vsub.f32 %v109, 1.0
    %v111 = vmul.f32 %v110, %v110
    %v112 = vld [vmem:[#allocation9] sm:$0xff]
    %v113 = vld [vmem:[#allocation9 + $0x8] sm:$0xf]
    %v115 = vcombine.high %v112, %v112
    %vm117 = vcmask 1043456
    %v118 = vsel %vm117, %v112, -inf
    %v119 = vrot.slane %v118, 4
    %v120 = vmax.f32 %v118, %v119
    %v121 = vrot.slane %v120, 2
    %v122 = vmax.f32 %v120, %v121
    %v123 = vrot.slane %v122, 1
    %v124 = vmax.f32 %v122, %v123
    %v125 = vsel %vm117, %v115, -inf
    %v126 = vrot.slane %v125, 4
    %v127 = vmax.f32 %v125, %v126
    %v128 = vrot.slane %v127, 2
    %v129 = vmax.f32 %v127, %v128
    %v130 = vrot.slane %v129, 1
    %v131 = vmax.f32 %v129, %v130
    %v132 = vsel %vm117, %v113, -inf
    %v133 = vrot.slane %v132, 4
    %v134 = vmax.f32 %v132, %v133
    %v135 = vrot.slane %v134, 2
    %v136 = vmax.f32 %v134, %v135
    %v137 = vrot.slane %v136, 1
    %v138 = vmax.f32 %v136, %v137
    %v141 = vcombine.low %v124, %v131
    %v143 = vsub.f32 %v112, %v141
    %v144 = vsub.f32 %v113, %v138
    %v145 = vmul.f32 %v143, 1.442695
    %v146 = vpow.pop %v145
    %v147 = vmul.f32 %v144, 1.442695
    %v148 = vpow.pop %v147
    %v150 = vcombine.high %v146, %v146
    %v152 = vsel %vm117, %v146, 0.0
    %v153 = vrot.slane %v152, 4
    %v154 = vadd.f32 %v152, %v153
    %v155 = vrot.slane %v154, 2
    %v156 = vadd.f32 %v154, %v155
    %v157 = vrot.slane %v156, 1
    %v158 = vadd.f32 %v156, %v157
    %v159 = vsel %vm117, %v150, 0.0
    %v160 = vrot.slane %v159, 4
    %v161 = vadd.f32 %v159, %v160
    %v162 = vrot.slane %v161, 2
    %v163 = vadd.f32 %v161, %v162
    %v164 = vrot.slane %v163, 1
    %v165 = vadd.f32 %v163, %v164
    %v166 = vsel %vm117, %v148, 0.0
    %v167 = vrot.slane %v166, 4
    %v168 = vadd.f32 %v166, %v167
    %v169 = vrot.slane %v168, 2
    %v170 = vadd.f32 %v168, %v169
    %v171 = vrot.slane %v170, 1
    %v172 = vadd.f32 %v170, %v171
    %v173 = vlog2.pop %v158
    %v174 = vmul.f32 %v173, 0.6931472
    %v175 = vlog2.pop %v165
    %v176 = vmul.f32 %v175, 0.6931472
    %v177 = vlog2.pop %v172
    %v178 = vmul.f32 %v177, 0.6931472
    %v179 = vadd.f32 %v124, %v174
    %v180 = vadd.f32 %v131, %v176
    %v181 = vadd.f32 %v138, %v178
    %v182 = vld [vmem:[%s4] sm:$0x7]
    %v183 = vlaneseq
    %v184 = vshrl.u32 %v183, 7
    %v185 = vlaneseq
    %v186 = vshrl.u32 %v185, 7
    %v187 = vsub.s32 0, %v186
    %v188 = vrot.slane %v182, %v187
    %v189 = vlaneseq
    %v190 = vshrl.u32 %v189, 7
    %v191 = vsub.s32 1, %v190
    %v192 = vrot.slane %v182, %v191
    %v193 = vlaneseq
    %v194 = vshrl.u32 %v193, 7
    %v195 = vsub.s32 2, %v194
    %v196 = vrot.slane %v182, %v195
    %vm197 = vcmp.eq.s32.totalorder %v184, %v188
    %vm198 = vcmp.eq.s32.totalorder %v184, %v192
    %vm199 = vcmp.eq.s32.totalorder %v184, %v196
    %v200 = vsel %vm197, %v112, 0.0
    %v201 = vsel %vm198, %v115, 0.0
    %v202 = vsel %vm199, %v113, 0.0
    %v203 = vsel %vm117, %v200, 0.0
    %v204 = vrot.slane %v203, 4
    %v205 = vadd.f32 %v203, %v204
    %v206 = vrot.slane %v205, 2
    %v207 = vadd.f32 %v205, %v206
    %v208 = vrot.slane %v207, 1
    %v209 = vadd.f32 %v207, %v208
    %v210 = vsel %vm117, %v201, 0.0
    %v211 = vrot.slane %v210, 4
    %v212 = vadd.f32 %v210, %v211
    %v213 = vrot.slane %v212, 2
    %v214 = vadd.f32 %v212, %v213
    %v215 = vrot.slane %v214, 1
    %v216 = vadd.f32 %v214, %v215
    %v217 = vsel %vm117, %v202, 0.0
    %v218 = vrot.slane %v217, 4
    %v219 = vadd.f32 %v217, %v218
    %v220 = vrot.slane %v219, 2
    %v221 = vadd.f32 %v219, %v220
    %v222 = vrot.slane %v221, 1
    %v223 = vadd.f32 %v221, %v222
    %vm224 = vcmp.ne.s32.totalorder %v182, 4294967295
    %v225 = vlaneseq
    %v226 = vand.u32 %v225, 127
    %v227 = vadd.s32 %v226, 128
    %v228 = vadd.s32 %v226, 256
    %s229 = smul.u32 0, 384
    %v230 = vstv %s229
    %v231 = vadd.s32 %v230, %v226
    %v232 = vadd.s32 %v230, %v227
    %v233 = vadd.s32 %v230, %v228
    %vm234 = vcmp.lt.s32.totalorder %v231, 300
    %vm235 = vcmp.lt.s32.totalorder %v232, 300
    %vm236 = vcmp.lt.s32.totalorder %v233, 300
    %v238 = vlaneseq
    %v239 = vshrl.u32 %v238, 7
    %v240 = vsub.s32 0, %v239
    %v241 = vrot.slane %v92, %v240
    %v242 = vlaneseq
    %v243 = vshrl.u32 %v242, 7
    %v244 = vsub.s32 1, %v243
    %v245 = vrot.slane %v92, %v244
    %v246 = vlaneseq
    %v247 = vshrl.u32 %v246, 7
    %v248 = vsub.s32 2, %v247
    %v249 = vrot.slane %v92, %v248
    %v253 = vsel %vm234, %v241, 0.0
    %v254 = vsel %vm235, %v245, 0.0
    %v255 = vsel %vm236, %v249, 0.0
    %v257 = vlaneseq
    %v258 = vshrl.u32 %v257, 7
    %v259 = vsub.s32 0, %v258
    %v260 = vrot.slane %v111, %v259
    %v261 = vlaneseq
    %v262 = vshrl.u32 %v261, 7
    %v263 = vsub.s32 1, %v262
    %v264 = vrot.slane %v111, %v263
    %v265 = vlaneseq
    %v266 = vshrl.u32 %v265, 7
    %v267 = vsub.s32 2, %v266
    %v268 = vrot.slane %v111, %v267
    %v272 = vsel %vm234, %v260, 0.0
    %v273 = vsel %vm235, %v264, 0.0
    %v274 = vsel %vm236, %v268, 0.0
    %v275 = vsel %vm234, 1, 0
    %v276 = vsel %vm235, 1, 0
    %v277 = vsel %vm236, 1, 0
    %v278 = vcombine.low %v275, %v276
    %v280 = vunpack.c.l.s4 1966171168
    %v281 = vunpack.c.0.s8 %v280
    %v282 = vlaneseq
    %v283 = vshrl.u32 %v282, 7
    %v284 = vsub.s32 %v281, %v283
    %v285 = vrot.slane %v278, %v284
    %v287 = vunpack.c.l.s4 1966171168
    %v288 = vunpack.c.0.s8 %v287
    %v289 = vlaneseq
    %v290 = vshrl.u32 %v289, 7
    %v291 = vsub.s32 %v288, %v290
    %v292 = vrot.slane %v277, %v291
    %v293 = vcombine.low %v285, %v292
    %v295 = vunpack.c.l.s4 1966171168
    %v296 = vunpack.c.0.s8 %v295
    %v297 = vlaneseq
    %v298 = vshrl.u32 %v297, 7
    %v299 = vsub.s32 %v296, %v298
    %v300 = vrot.slane %v293, %v299
    %vm301 = vcmp.ne.s32.totalorder %v300, 0
    %vm302 = vmand %vm224, %vm301
    %v303 = vsub.f32 %v179, %v209
    %v304 = vsub.f32 %v180, %v216
    %v305 = vsub.f32 %v181, %v223
    %v309 = vcombine.low %v303, %v304
    %v311 = vunpack.c.l.s4 1966171168
    %v312 = vunpack.c.0.s8 %v311
    %v313 = vlaneseq
    %v314 = vshrl.u32 %v313, 7
    %v315 = vsub.s32 %v312, %v314
    %v316 = vrot.slane %v309, %v315
    %v318 = vunpack.c.l.s4 1966171168
    %v319 = vunpack.c.0.s8 %v318
    %v320 = vlaneseq
    %v321 = vshrl.u32 %v320, 7
    %v322 = vsub.s32 %v319, %v321
    %v323 = vrot.slane %v305, %v322
    %v324 = vcombine.low %v316, %v323
    %v326 = vunpack.c.l.s4 1966171168
    %v327 = vunpack.c.0.s8 %v326
    %v328 = vlaneseq
    %v329 = vshrl.u32 %v328, 7
    %v330 = vsub.s32 %v327, %v329
    %v331 = vrot.slane %v324, %v330
    %v333 = vsel %vm302, %v331, 0.0
    %v334 = vsel %vm302, 1, 0
    %v335 = vcvt.s32.f32 %v334
    %v336 = vld [vmem:[#allocation2] ss:$8 sm:$0x7]
    %v340 = vcombine.low %v253, %v254
    %v342 = vunpack.c.l.s4 1966171168
    %v343 = vunpack.c.0.s8 %v342
    %v344 = vlaneseq
    %v345 = vshrl.u32 %v344, 7
    %v346 = vsub.s32 %v343, %v345
    %v347 = vrot.slane %v340, %v346
    %v349 = vunpack.c.l.s4 1966171168
    %v350 = vunpack.c.0.s8 %v349
    %v351 = vlaneseq
    %v352 = vshrl.u32 %v351, 7
    %v353 = vsub.s32 %v350, %v352
    %v354 = vrot.slane %v255, %v353
    %v355 = vcombine.low %v347, %v354
    %v357 = vunpack.c.l.s4 1966171168
    %v358 = vunpack.c.0.s8 %v357
    %v359 = vlaneseq
    %v360 = vshrl.u32 %v359, 7
    %v361 = vsub.s32 %v358, %v360
    %v362 = vrot.slane %v355, %v361
    %v364 = vadd.f32 %v336, %v362
    %v365 = vlaneseq
    %vm366 = vcmp.ge.s32.totalorder %v365, 0
    %vm367 = vcmp.lt.s32.totalorder %v365, 384
    %vm368 = vmand %vm366, %vm367
    %369 = vst.msk [vmem:[#allocation2] ss:$8 sm:$0x7] %vm368, %v364
    %370 = vst.msk [vmem:[#allocation2] ss:$8 sm:$0x0] %vm368, %v364
    %s371 = scalar_lea.vmem [#allocation2], 1
    %v372 = vld [vmem:[%s371] ss:$8 sm:$0x7]
    %v376 = vcombine.low %v272, %v273
    %v378 = vunpack.c.l.s4 1966171168
    %v379 = vunpack.c.0.s8 %v378
    %v380 = vlaneseq
    %v381 = vshrl.u32 %v380, 7
    %v382 = vsub.s32 %v379, %v381
    %v383 = vrot.slane %v376, %v382
    %v385 = vunpack.c.l.s4 1966171168
    %v386 = vunpack.c.0.s8 %v385
    %v387 = vlaneseq
    %v388 = vshrl.u32 %v387, 7
    %v389 = vsub.s32 %v386, %v388
    %v390 = vrot.slane %v274, %v389
    %v391 = vcombine.low %v383, %v390
    %v393 = vunpack.c.l.s4 1966171168
    %v394 = vunpack.c.0.s8 %v393
    %v395 = vlaneseq
    %v396 = vshrl.u32 %v395, 7
    %v397 = vsub.s32 %v394, %v396
    %v398 = vrot.slane %v391, %v397
    %v400 = vadd.f32 %v372, %v398
    %401 = vst.msk [vmem:[%s371] ss:$8 sm:$0x7] %vm368, %v400
    %402 = vst.msk [vmem:[%s371] ss:$8 sm:$0x0] %vm368, %v400
    %s403 = scalar_lea.vmem [#allocation2], 2
    %v404 = vld [vmem:[%s403] ss:$8 sm:$0x7]
    %v405 = vadd.f32 %v404, %v333
    %406 = vst.msk [vmem:[%s403] ss:$8 sm:$0x7] %vm368, %v405
    %407 = vst.msk [vmem:[%s403] ss:$8 sm:$0x0] %vm368, %v405
    %s408 = scalar_lea.vmem [#allocation2], 3
    %v409 = vld [vmem:[%s408] ss:$8 sm:$0x7]
    %v410 = vadd.f32 %v409, %v335
    %411 = vst.msk [vmem:[%s408] ss:$8 sm:$0x7] %vm368, %v410
    %412 = vst.msk [vmem:[%s408] ss:$8 sm:$0x0] %vm368, %v410
    // Predicated region
    $region42: #{tpu_custom_call.1} parent=1 // pred_check
      %p413 = pneg %p68
    $region43: #{tpu_custom_call.1} parent=1 // pred_check_branch
      %415 = sbr.rel (%p413) target = $region45
    $region44: #{tpu_custom_call.1} parent=1 // pred_region
      %v416 = vld [vmem:[#allocation2] sm:$0xff]
      %v417 = vld [vmem:[#allocation2 + $0x8] sm:$0xff]
      %v418 = vld [vmem:[#allocation2 + $0x10] sm:$0xff]
      %v419 = vadd.f32 %v416, %v417
      %v420 = vadd.f32 %v419, %v418
      %421 = vadd.xlane.f32.xlu0 %v420
      %v422 = vpop.xlane.xlu0 %421
      %423 = vst [vmem:[#allocation11] sm:$0xff] %v422
    $region45: #{tpu_custom_call.1} parent=1 // pred_fallthru
      _
    // Predicated region
    $region46: #{tpu_custom_call.1} parent=1 // pred_check
      _
    $region47: #{tpu_custom_call.1} parent=1 // pred_check_branch
      %425 = sbr.rel (0) target = $region49
    $region48: #{tpu_custom_call.1} parent=1 // pred_region
      %s427 = ssub.s32 128, 128
      %428 = vsyncadd [#allocation5], %s427
      %s430 = sshll.u32 [#allocation11], 4
      %s431 = int_to_ptr.vmem [resolvable:$true] %s430
      %433 = dma.vmem_to_hbm [thread:$0]  %s431, 128, %s5, [#allocation5]
    $region49: #{tpu_custom_call.1} parent=1 // pred_fallthru
      _
    // Predicated region
    $region50: #{tpu_custom_call.1} parent=1 // pred_check
      _
    $region51: #{tpu_custom_call.1} parent=1 // pred_check_branch
      %435 = sbr.rel (0) target = $region53
    $region52: #{tpu_custom_call.1} parent=1 // pred_region
      %436 = dma.done [#allocation5], 128
    $region53: #{tpu_custom_call.1} parent=1 // pred_fallthru
      _
    %437 = vsyncpa [#allocation4], 1
    %438 = vsyncpa [#allocation7], 1
    %439 = vsyncpa [#allocation10], 1
    %440 = vsyncpa [#allocation5], 1

</llo_original>
